<compile_context>
chip_gen: v7x
topology: tpu7x:2x2x1
jax: 0.10.0
libtpu: 0.0.40
codegen_flags: <defaults>
</compile_context>

<pallas_src>
import jax
import jax.numpy as jnp
from jax.experimental import pallas as pl
from jax.experimental.pallas import tpu as pltpu


def _round_up(x, m):
    return ((x + m - 1) // m) * m


# ----------------------------------------------------------------------------
# Kernel 1: masked cross-entropy over flattened (N, V) logits, tiled over N.
#   nll_i = logsumexp(x_i) - x_i[label_i]
#   out   = sum(nll * mask) / (sum(mask) + 1e-10)
# Each grid step writes a lane-dense (1, 8, 128) partial block:
#   [0, 0, 0] = partial numerator, [0, 0, 1] = partial mask sum.
# ----------------------------------------------------------------------------
def ce_loss_kernel(logits_ref, labels_ref, mask_ref, out_ref):
    x = logits_ref[...].astype(jnp.float32)          # (TILE_N, V)
    labels = labels_ref[...]                         # (TILE_N, 1) int32
    mask = mask_ref[...].astype(jnp.float32)         # (TILE_N, 1)

    tn, v = x.shape
    m = jnp.max(x, axis=-1, keepdims=True)           # (TILE_N, 1)
    xs = x - m                                       # single shifted copy reused below
    sum_exp = jnp.sum(jnp.exp(xs), axis=-1, keepdims=True)

    vocab_ids = jax.lax.broadcasted_iota(jnp.int32, (tn, v), 1)
    label_shift = jnp.sum(
        jnp.where(vocab_ids == labels, xs, 0.0), axis=-1, keepdims=True
    )                                                # x[label] - m

    nll = jnp.log(sum_exp) - label_shift             # (TILE_N, 1)
    num = jnp.sum(nll * mask)
    den = jnp.sum(mask)

    sub = jax.lax.broadcasted_iota(jnp.int32, (1, 8, 128), 1)
    lane = jax.lax.broadcasted_iota(jnp.int32, (1, 8, 128), 2)
    out_ref[...] = jnp.where(
        (sub == 0) & (lane == 0), num,
        jnp.where((sub == 0) & (lane == 1), den, 0.0),
    )


def _ce_tile_rows(n, v):
    # ~2 MiB f32 logits block (Pallas double-buffers it), capped at 1024 rows.
    budget_bytes = 2 * 1024 * 1024
    t = max(8, min(1024, budget_bytes // (v * 4)))
    t = (t // 8) * 8
    return min(max(t, 8), _round_up(n, 8))


def masked_cross_entropy(logits_2d, labels_2d, mask_2d):
    """logits_2d: (N, V) f32, labels_2d: (N, 1) i32, mask_2d: (N, 1) f32 -> scalar."""
    n, v = logits_2d.shape
    tile_n = _ce_tile_rows(n, v)
    n_pad = _round_up(n, tile_n)
    if n_pad != n:
        pad = n_pad - n
        logits_2d = jnp.pad(logits_2d, ((0, pad), (0, 0)))
        labels_2d = jnp.pad(labels_2d, ((0, pad), (0, 0)))
        mask_2d = jnp.pad(mask_2d, ((0, pad), (0, 0)))   # zero mask -> no contribution
    num_tiles = n_pad // tile_n

    partials = pl.pallas_call(
        ce_loss_kernel,
        out_shape=jax.ShapeDtypeStruct((num_tiles, 8, 128), jnp.float32),
        grid_spec=pltpu.PrefetchScalarGridSpec(
            num_scalar_prefetch=0,
            grid=(num_tiles,),
            in_specs=[
                pl.BlockSpec((tile_n, v), lambda i: (i, 0)),
                pl.BlockSpec((tile_n, 1), lambda i: (i, 0)),
                pl.BlockSpec((tile_n, 1), lambda i: (i, 0)),
            ],
            out_specs=pl.BlockSpec((1, 8, 128), lambda i: (i, 0, 0)),
        ),
        compiler_params=pltpu.CompilerParams(dimension_semantics=("parallel",)),
    )(logits_2d, labels_2d.astype(jnp.int32), mask_2d.astype(jnp.float32))

    num = jnp.sum(partials[:, 0, 0])
    den = jnp.sum(partials[:, 0, 1]) + 1e-10
    return num / den


# ----------------------------------------------------------------------------
# Kernel 2a: row-normalized similarity embedding (tiled over vocab rows).
#   es   = ReLU(E @ W + b)
#   es_n = es * rsqrt(sum(es^2, -1) + eps)
# ----------------------------------------------------------------------------
def sim_embed_kernel(emb_ref, w_ref, b_ref, out_ref):
    e = emb_ref[...].astype(jnp.float32)              # (TV, H)
    w = w_ref[...].astype(jnp.float32)                # (H, H)
    b = b_ref[...].astype(jnp.float32)                # (1, H)
    es = jnp.maximum(
        jnp.dot(e, w, preferred_element_type=jnp.float32) + b, 0.0
    )
    inv = jax.lax.rsqrt(jnp.sum(es * es, axis=-1, keepdims=True) + 1e-12)
    out_ref[...] = es * inv


# ----------------------------------------------------------------------------
# Kernel 2b: masked L1 cosine loss, 2-D tiled over the (V, V) matrix.
#   cos_tile = es_n[i_tile] @ es_n[j_tile]^T   (dot_general, contract last axes)
#   partial  = sum(where(mat != 0, |cos - mat|, 0)),  count = sum(mat != 0)
# Each (i, j) tile writes a lane-dense (1, 1, 8, 128) partial block.
# ----------------------------------------------------------------------------
def sim_loss_kernel(esn_i_ref, esn_j_ref, mat_ref, out_ref):
    ei = esn_i_ref[...]                               # (TV, H) f32
    ej = esn_j_ref[...]                               # (TV, H) f32
    mat = mat_ref[...].astype(jnp.float32)            # (TV, TV)

    cos = jax.lax.dot_general(
        ei, ej, (((1,), (1,)), ((), ())), preferred_element_type=jnp.float32
    )                                                 # (TV, TV)

    nz = mat != 0.0
    part_num = jnp.sum(jnp.where(nz, jnp.abs(cos - mat), 0.0))   # 'l1' sim loss
    part_cnt = jnp.sum(nz.astype(jnp.float32))

    sub = jax.lax.broadcasted_iota(jnp.int32, (1, 1, 8, 128), 2)
    lane = jax.lax.broadcasted_iota(jnp.int32, (1, 1, 8, 128), 3)
    out_ref[...] = jnp.where(
        (sub == 0) & (lane == 0), part_num,
        jnp.where((sub == 0) & (lane == 1), part_cnt, 0.0),
    )


def word_similarity_loss(embedding, sim_w, sim_b, matrix):
    """embedding: (V, H), sim_w: (H, H), sim_b: (1, H), matrix: (V, V) -> scalar."""
    v, h = embedding.shape
    tv = min(256, _round_up(v, 8))
    v_pad = _round_up(v, tv)

    emb = embedding.astype(jnp.float32)
    mat = matrix.astype(jnp.float32)
    if v_pad != v:
        pad = v_pad - v
        emb = jnp.pad(emb, ((0, pad), (0, 0)))
        mat = jnp.pad(mat, ((0, pad), (0, pad)))      # zero matrix -> masked out

    # --- pass 1: row-normalized similarity embeddings --------------------------
    gv = v_pad // tv
    esn = pl.pallas_call(
        sim_embed_kernel,
        out_shape=jax.ShapeDtypeStruct((v_pad, h), jnp.float32),
        grid_spec=pltpu.PrefetchScalarGridSpec(
            num_scalar_prefetch=0,
            grid=(gv,),
            in_specs=[
                pl.BlockSpec((tv, h), lambda i: (i, 0)),
                pl.BlockSpec((h, h), lambda i: (0, 0)),
                pl.BlockSpec((1, h), lambda i: (0, 0)),
            ],
            out_specs=pl.BlockSpec((tv, h), lambda i: (i, 0)),
        ),
        compiler_params=pltpu.CompilerParams(dimension_semantics=("parallel",)),
    )(emb, sim_w.astype(jnp.float32), sim_b.astype(jnp.float32))

    # --- pass 2: tiled masked L1 over the (V, V) cosine matrix ------------------
    partials = pl.pallas_call(
        sim_loss_kernel,
        out_shape=jax.ShapeDtypeStruct((gv, gv, 8, 128), jnp.float32),
        grid_spec=pltpu.PrefetchScalarGridSpec(
            num_scalar_prefetch=0,
            grid=(gv, gv),
            in_specs=[
                pl.BlockSpec((tv, h), lambda i, j: (i, 0)),
                pl.BlockSpec((tv, h), lambda i, j: (j, 0)),
                pl.BlockSpec((tv, tv), lambda i, j: (i, j)),
            ],
            out_specs=pl.BlockSpec((1, 1, 8, 128), lambda i, j: (i, j, 0, 0)),
        ),
        compiler_params=pltpu.CompilerParams(
            dimension_semantics=("parallel", "parallel")
        ),
    )(esn, esn, mat)

    num = jnp.sum(partials[:, :, 0, 0])
    cnt = jnp.sum(partials[:, :, 0, 1])
    return num / (cnt + 1e-10)


# ----------------------------------------------------------------------------
# Forward (losses only; encoder/decoder stubbed out, see TODO above).
# ----------------------------------------------------------------------------
def model_forward(word_probs, labels, labels_mask, embedding, sim_w, sim_b, matrix):
    b, l, v = word_probs.shape
    logits_2d = word_probs.reshape(b * l, v).astype(jnp.float32)
    labels_2d = labels.reshape(b * l, 1).astype(jnp.int32)
    mask_2d = labels_mask.reshape(b * l, 1).astype(jnp.float32)

    word_average_loss = masked_cross_entropy(logits_2d, labels_2d, mask_2d)
    word_sim_loss = word_similarity_loss(embedding, sim_w, sim_b, matrix)

    context_loss = jnp.float32(0.0)
    word_state_loss = jnp.float32(0.0)
    counting_loss = jnp.float32(0.0)
    word_alphas = None  # produced by the external decoder
    return word_probs, (
        word_average_loss,
        word_sim_loss,
        context_loss,
        word_state_loss,
        counting_loss,
        word_alphas,
    )


if __name__ == "__main__":
    B, L, V, H = 2, 8, 128, 32
    key = jax.random.PRNGKey(0)
    k1, k2, k3, k4, k5, k6 = jax.random.split(key, 6)

    word_probs = jax.random.normal(k1, (B, L, V), dtype=jnp.float32)
    labels = jax.random.randint(k2, (B, L), 0, V, dtype=jnp.int32)
    labels_mask = (jax.random.uniform(k3, (B, L)) > 0.2).astype(jnp.float32)

    embedding = jax.random.normal(k4, (V, H), dtype=jnp.float32)
    sim_w = jax.random.normal(k5, (H, H), dtype=jnp.float32) * (1.0 / jnp.sqrt(H))
    sim_b = jnp.zeros((1, H), dtype=jnp.float32)

    # Synthetic similarity "matrix" (stand-in for the pickled one): sparse-ish.
    raw = jax.random.uniform(k6, (V, V), dtype=jnp.float32)
    matrix = jnp.where(raw > 0.5, raw, 0.0)

    fwd = jax.jit(model_forward)
    probs_out, losses = fwd(
        word_probs, labels, labels_mask, embedding, sim_w, sim_b, matrix
    )
    jax.block_until_ready(probs_out)
    jax.block_until_ready(losses[0])
    jax.block_until_ready(losses[1])
    print("KERNEL_OK")
</pallas_src>

<mosaic_0001>
module attributes {stable_mosaic.version = 11 : i64} {
  func.func @sim_loss_kernel(%arg0: i32, %arg1: i32, %arg2: memref<128x32xf32, #tpu.memory_space<vmem>>, %arg3: memref<128x32xf32, #tpu.memory_space<vmem>>, %arg4: memref<128x128xf32, #tpu.memory_space<vmem>>, %arg5: memref<1x1x8x128xf32, #tpu.memory_space<vmem>>) attributes {dimension_semantics = [#tpu.dimension_semantics<parallel>, #tpu.dimension_semantics<parallel>], iteration_bounds = array<i64: 1, 1>, scalar_prefetch = 0 : i64, scratch_operands = 0 : i64, tpu.core_type = #tpu.core_type<tc>, window_params = [{transform_indices = @transform_0, window_bounds = array<i64: 128, 32>}, {transform_indices = @transform_1, window_bounds = array<i64: 128, 32>}, {transform_indices = @transform_2, window_bounds = array<i64: 128, 128>}, {transform_indices = @transform_3, window_bounds = array<i64: 1, 1, 8, 128>}]} {
    %c0 = arith.constant 0 : index
    %c0_0 = arith.constant 0 : index
    %0 = vector.load %arg2[%c0, %c0_0] : memref<128x32xf32, #tpu.memory_space<vmem>>, vector<128x32xf32>
    %c0_1 = arith.constant 0 : index
    %c0_2 = arith.constant 0 : index
    %1 = vector.load %arg3[%c0_1, %c0_2] : memref<128x32xf32, #tpu.memory_space<vmem>>, vector<128x32xf32>
    %c0_3 = arith.constant 0 : index
    %c0_4 = arith.constant 0 : index
    %2 = vector.load %arg4[%c0_3, %c0_4] : memref<128x128xf32, #tpu.memory_space<vmem>>, vector<128x128xf32>
    %cst = arith.constant dense<0.000000e+00> : vector<128x128xf32>
    %3 = tpu.matmul %0, %1, %cst {dimension_numbers = #tpu.dot_dimension_numbers<[1], [1], [0], [0], [0, 0, 1, 0], [], []>} : vector<128x32xf32>, vector<128x32xf32>, vector<128x128xf32> -> vector<128x128xf32>
    %cst_5 = arith.constant 0.000000e+00 : f32
    %4 = vector.broadcast %cst_5 : f32 to vector<128x128xf32>
    %5 = arith.cmpf one, %2, %4 : vector<128x128xf32>
    %6 = arith.subf %3, %2 : vector<128x128xf32>
    %7 = math.absf %6 : vector<128x128xf32>
    %cst_6 = arith.constant 0.000000e+00 : f32
    %8 = vector.broadcast %cst_6 : f32 to vector<128x128xf32>
    %9 = arith.select %5, %7, %8 : vector<128x128xi1>, vector<128x128xf32>
    %10 = vector.shape_cast %9 : vector<128x128xf32> to vector<1x128x128xf32>
    %cst_7 = arith.constant dense<0.000000e+00> : vector<1xf32>
    %11 = vector.multi_reduction <add>, %10, %cst_7 [1, 2] : vector<1x128x128xf32> to vector<1xf32>
    %12 = vector.shape_cast %11 : vector<1xf32> to vector<1x1x1xf32>
    %13 = vector.extract %12[0, 0, 0] : f32 from vector<1x1x1xf32>
    %14 = arith.extui %5 : vector<128x128xi1> to vector<128x128xi32>
    %15 = arith.sitofp %14 : vector<128x128xi32> to vector<128x128xf32>
    %16 = vector.shape_cast %15 : vector<128x128xf32> to vector<1x128x128xf32>
    %cst_8 = arith.constant dense<0.000000e+00> : vector<1xf32>
    %17 = vector.multi_reduction <add>, %16, %cst_8 [1, 2] : vector<1x128x128xf32> to vector<1xf32>
    %18 = vector.shape_cast %17 : vector<1xf32> to vector<1x1x1xf32>
    %19 = vector.extract %18[0, 0, 0] : f32 from vector<1x1x1xf32>
    %20 = tpu.iota {dimensions = array<i32: 2>} : vector<1x1x8x128xi32>
    %21 = tpu.iota {dimensions = array<i32: 3>} : vector<1x1x8x128xi32>
    %c0_i32 = arith.constant 0 : i32
    %22 = vector.broadcast %c0_i32 : i32 to vector<1x1x8x128xi32>
    %23 = arith.cmpi eq, %20, %22 : vector<1x1x8x128xi32>
    %c0_i32_9 = arith.constant 0 : i32
    %24 = vector.broadcast %c0_i32_9 : i32 to vector<1x1x8x128xi32>
    %25 = arith.cmpi eq, %21, %24 : vector<1x1x8x128xi32>
    %26 = arith.andi %23, %25 : vector<1x1x8x128xi1>
    %c0_i32_10 = arith.constant 0 : i32
    %27 = vector.broadcast %c0_i32_10 : i32 to vector<1x1x8x128xi32>
    %28 = arith.cmpi eq, %20, %27 : vector<1x1x8x128xi32>
    %c1_i32 = arith.constant 1 : i32
    %29 = vector.broadcast %c1_i32 : i32 to vector<1x1x8x128xi32>
    %30 = arith.cmpi eq, %21, %29 : vector<1x1x8x128xi32>
    %31 = arith.andi %28, %30 : vector<1x1x8x128xi1>
    %cst_11 = arith.constant 0.000000e+00 : f32
    %32 = vector.broadcast %19 : f32 to vector<1x1x8x128xf32>
    %33 = vector.broadcast %cst_11 : f32 to vector<1x1x8x128xf32>
    %34 = arith.select %31, %32, %33 : vector<1x1x8x128xi1>, vector<1x1x8x128xf32>
    %35 = vector.broadcast %13 : f32 to vector<1x1x8x128xf32>
    %36 = arith.select %26, %35, %34 : vector<1x1x8x128xi1>, vector<1x1x8x128xf32>
    %c0_12 = arith.constant 0 : index
    %c0_13 = arith.constant 0 : index
    %c0_14 = arith.constant 0 : index
    %c0_15 = arith.constant 0 : index
    %37 = vector.load %arg5[%c0_12, %c0_13, %c0_14, %c0_15] : memref<1x1x8x128xf32, #tpu.memory_space<vmem>>, vector<1x1x8x128xf32>
    tpu.vector_store %arg5[%c0_12, %c0_13, %c0_14, %c0_15], %36 {strides = array<i32>} : memref<1x1x8x128xf32, #tpu.memory_space<vmem>>, vector<1x1x8x128xf32>,
    return
  }
  func.func @transform_0(%arg0: i32, %arg1: i32) -> (i32, i32) {
    %c0_i32 = arith.constant 0 : i32
    %c0_i32_0 = arith.constant 0 : i32
    return %arg0, %c0_i32 : i32, i32
  }
  func.func @transform_1(%arg0: i32, %arg1: i32) -> (i32, i32) {
    %c0_i32 = arith.constant 0 : i32
    %c0_i32_0 = arith.constant 0 : i32
    return %arg1, %c0_i32 : i32, i32
  }
  func.func @transform_2(%arg0: i32, %arg1: i32) -> (i32, i32) {
    %c0_i32 = arith.constant 0 : i32
    return %arg0, %arg1 : i32, i32
  }
  func.func @transform_3(%arg0: i32, %arg1: i32) -> (i32, i32, i32, i32) {
    %c0_i32 = arith.constant 0 : i32
    %c0_i32_0 = arith.constant 0 : i32
    %c0_i32_1 = arith.constant 0 : i32
    return %arg0, %arg1, %c0_i32, %c0_i32_0 : i32, i32, i32, i32
  }
}

module attributes {stable_mosaic.version = 11 : i64} {
  func.func @sim_embed_kernel(%arg0: i32, %arg1: memref<128x32xf32, #tpu.memory_space<vmem>>, %arg2: memref<32x32xf32, #tpu.memory_space<vmem>>, %arg3: memref<1x32xf32, #tpu.memory_space<vmem>>, %arg4: memref<128x32xf32, #tpu.memory_space<vmem>>) attributes {dimension_semantics = [#tpu.dimension_semantics<parallel>], iteration_bounds = array<i64: 1>, scalar_prefetch = 0 : i64, scratch_operands = 0 : i64, tpu.core_type = #tpu.core_type<tc>, window_params = [{transform_indices = @transform_0, window_bounds = array<i64: 128, 32>}, {pipeline_mode = #tpu.pipeline_mode<synchronous>, transform_indices = @transform_1, window_bounds = array<i64: 32, 32>}, {pipeline_mode = #tpu.pipeline_mode<synchronous>, transform_indices = @transform_2, window_bounds = array<i64: 1, 32>}, {transform_indices = @transform_3, window_bounds = array<i64: 128, 32>}]} {
    %c0 = arith.constant 0 : index
    %c0_0 = arith.constant 0 : index
    %0 = vector.load %arg1[%c0, %c0_0] : memref<128x32xf32, #tpu.memory_space<vmem>>, vector<128x32xf32>
    %c0_1 = arith.constant 0 : index
    %c0_2 = arith.constant 0 : index
    %1 = vector.load %arg2[%c0_1, %c0_2] : memref<32x32xf32, #tpu.memory_space<vmem>>, vector<32x32xf32>
    %c0_3 = arith.constant 0 : index
    %c0_4 = arith.constant 0 : index
    %2 = vector.load %arg3[%c0_3, %c0_4] : memref<1x32xf32, #tpu.memory_space<vmem>>, vector<1x32xf32>
    %cst = arith.constant dense<0.000000e+00> : vector<128x32xf32>
    %3 = tpu.matmul %0, %1, %cst {dimension_numbers = #tpu.dot_dimension_numbers<[1], [0], [0], [1], [0, 0, 1, 1], [], []>} : vector<128x32xf32>, vector<32x32xf32>, vector<128x32xf32> -> vector<128x32xf32>
    %4 = vector.broadcast %2 : vector<1x32xf32> to vector<128x32xf32>
    %5 = arith.addf %3, %4 : vector<128x32xf32>
    %cst_5 = arith.constant 0.000000e+00 : f32
    %6 = vector.broadcast %cst_5 : f32 to vector<128x32xf32>
    %7 = arith.maximumf %5, %6 : vector<128x32xf32>
    %8 = arith.mulf %7, %7 : vector<128x32xf32>
    %cst_6 = arith.constant dense<0.000000e+00> : vector<128xf32>
    %9 = vector.multi_reduction <add>, %8, %cst_6 [1] : vector<128x32xf32> to vector<128xf32>
    %10 = vector.shape_cast %9 : vector<128xf32> to vector<128x1xf32>
    %cst_7 = arith.constant 9.99999996E-13 : f32
    %11 = vector.broadcast %cst_7 : f32 to vector<128x1xf32>
    %12 = arith.addf %10, %11 : vector<128x1xf32>
    %13 = math.rsqrt %12 : vector<128x1xf32>
    %14 = vector.broadcast %13 : vector<128x1xf32> to vector<128x32xf32>
    %15 = arith.mulf %7, %14 : vector<128x32xf32>
    %c0_8 = arith.constant 0 : index
    %c0_9 = arith.constant 0 : index
    %16 = vector.load %arg4[%c0_8, %c0_9] : memref<128x32xf32, #tpu.memory_space<vmem>>, vector<128x32xf32>
    tpu.vector_store %arg4[%c0_8, %c0_9], %15 {strides = array<i32>} : memref<128x32xf32, #tpu.memory_space<vmem>>, vector<128x32xf32>,
    return
  }
  func.func @transform_0(%arg0: i32) -> (i32, i32) {
    %c0_i32 = arith.constant 0 : i32
    %c0_i32_0 = arith.constant 0 : i32
    return %arg0, %c0_i32 : i32, i32
  }
  func.func @transform_1(%arg0: i32) -> (i32, i32) {
    %c0_i32 = arith.constant 0 : i32
    %c0_i32_0 = arith.constant 0 : i32
    %c0_i32_1 = arith.constant 0 : i32
    return %c0_i32, %c0_i32_0 : i32, i32
  }
  func.func @transform_2(%arg0: i32) -> (i32, i32) {
    %c0_i32 = arith.constant 0 : i32
    %c0_i32_0 = arith.constant 0 : i32
    %c0_i32_1 = arith.constant 0 : i32
    return %c0_i32, %c0_i32_0 : i32, i32
  }
  func.func @transform_3(%arg0: i32) -> (i32, i32) {
    %c0_i32 = arith.constant 0 : i32
    %c0_i32_0 = arith.constant 0 : i32
    return %arg0, %c0_i32 : i32, i32
  }
}

module attributes {stable_mosaic.version = 11 : i64} {
  func.func @ce_loss_kernel(%arg0: i32, %arg1: memref<16x128xf32, #tpu.memory_space<vmem>>, %arg2: memref<16x1xi32, #tpu.memory_space<vmem>>, %arg3: memref<16x1xf32, #tpu.memory_space<vmem>>, %arg4: memref<1x8x128xf32, #tpu.memory_space<vmem>>) attributes {dimension_semantics = [#tpu.dimension_semantics<parallel>], iteration_bounds = array<i64: 1>, scalar_prefetch = 0 : i64, scratch_operands = 0 : i64, tpu.core_type = #tpu.core_type<tc>, window_params = [{transform_indices = @transform_0, window_bounds = array<i64: 16, 128>}, {transform_indices = @transform_1, window_bounds = array<i64: 16, 1>}, {transform_indices = @transform_2, window_bounds = array<i64: 16, 1>}, {transform_indices = @transform_3, window_bounds = array<i64: 1, 8, 128>}]} {
    %c0 = arith.constant 0 : index
    %c0_0 = arith.constant 0 : index
    %0 = vector.load %arg1[%c0, %c0_0] : memref<16x128xf32, #tpu.memory_space<vmem>>, vector<16x128xf32>
    %c0_1 = arith.constant 0 : index
    %c0_2 = arith.constant 0 : index
    %1 = vector.load %arg2[%c0_1, %c0_2] : memref<16x1xi32, #tpu.memory_space<vmem>>, vector<16x1xi32>
    %c0_3 = arith.constant 0 : index
    %c0_4 = arith.constant 0 : index
    %2 = vector.load %arg3[%c0_3, %c0_4] : memref<16x1xf32, #tpu.memory_space<vmem>>, vector<16x1xf32>
    %cst = arith.constant dense<0xFF800000> : vector<16xf32>
    %3 = vector.multi_reduction <maximumf>, %0, %cst [1] : vector<16x128xf32> to vector<16xf32>
    %4 = vector.shape_cast %3 : vector<16xf32> to vector<16x1xf32>
    %5 = vector.broadcast %4 : vector<16x1xf32> to vector<16x128xf32>
    %6 = arith.subf %0, %5 : vector<16x128xf32>
    %7 = math.exp %6 : vector<16x128xf32>
    %cst_5 = arith.constant dense<0.000000e+00> : vector<16xf32>
    %8 = vector.multi_reduction <add>, %7, %cst_5 [1] : vector<16x128xf32> to vector<16xf32>
    %9 = vector.shape_cast %8 : vector<16xf32> to vector<16x1xf32>
    %10 = tpu.iota {dimensions = array<i32: 1>} : vector<16x128xi32>
    %11 = vector.broadcast %1 : vector<16x1xi32> to vector<16x128xi32>
    %12 = arith.cmpi eq, %10, %11 : vector<16x128xi32>
    %cst_6 = arith.constant 0.000000e+00 : f32
    %13 = vector.broadcast %cst_6 : f32 to vector<16x128xf32>
    %14 = arith.select %12, %6, %13 : vector<16x128xi1>, vector<16x128xf32>
    %cst_7 = arith.constant dense<0.000000e+00> : vector<16xf32>
    %15 = vector.multi_reduction <add>, %14, %cst_7 [1] : vector<16x128xf32> to vector<16xf32>
    %16 = vector.shape_cast %15 : vector<16xf32> to vector<16x1xf32>
    %17 = math.log %9 : vector<16x1xf32>
    %18 = arith.subf %17, %16 : vector<16x1xf32>
    %19 = arith.mulf %18, %2 : vector<16x1xf32>
    %20 = vector.shape_cast %19 : vector<16x1xf32> to vector<1x16x1xf32>
    %cst_8 = arith.constant dense<0.000000e+00> : vector<1xf32>
    %21 = vector.multi_reduction <add>, %20, %cst_8 [1, 2] : vector<1x16x1xf32> to vector<1xf32>
    %22 = vector.shape_cast %21 : vector<1xf32> to vector<1x1x1xf32>
    %23 = vector.extract %22[0, 0, 0] : f32 from vector<1x1x1xf32>
    %24 = vector.shape_cast %2 : vector<16x1xf32> to vector<1x16x1xf32>
    %cst_9 = arith.constant dense<0.000000e+00> : vector<1xf32>
    %25 = vector.multi_reduction <add>, %24, %cst_9 [1, 2] : vector<1x16x1xf32> to vector<1xf32>
    %26 = vector.shape_cast %25 : vector<1xf32> to vector<1x1x1xf32>
    %27 = vector.extract %26[0, 0, 0] : f32 from vector<1x1x1xf32>
    %28 = tpu.iota {dimensions = array<i32: 1>} : vector<1x8x128xi32>
    %29 = tpu.iota {dimensions = array<i32: 2>} : vector<1x8x128xi32>
    %c0_i32 = arith.constant 0 : i32
    %30 = vector.broadcast %c0_i32 : i32 to vector<1x8x128xi32>
    %31 = arith.cmpi eq, %28, %30 : vector<1x8x128xi32>
    %c0_i32_10 = arith.constant 0 : i32
    %32 = vector.broadcast %c0_i32_10 : i32 to vector<1x8x128xi32>
    %33 = arith.cmpi eq, %29, %32 : vector<1x8x128xi32>
    %34 = arith.andi %31, %33 : vector<1x8x128xi1>
    %c0_i32_11 = arith.constant 0 : i32
    %35 = vector.broadcast %c0_i32_11 : i32 to vector<1x8x128xi32>
    %36 = arith.cmpi eq, %28, %35 : vector<1x8x128xi32>
    %c1_i32 = arith.constant 1 : i32
    %37 = vector.broadcast %c1_i32 : i32 to vector<1x8x128xi32>
    %38 = arith.cmpi eq, %29, %37 : vector<1x8x128xi32>
    %39 = arith.andi %36, %38 : vector<1x8x128xi1>
    %cst_12 = arith.constant 0.000000e+00 : f32
    %40 = vector.broadcast %27 : f32 to vector<1x8x128xf32>
    %41 = vector.broadcast %cst_12 : f32 to vector<1x8x128xf32>
    %42 = arith.select %39, %40, %41 : vector<1x8x128xi1>, vector<1x8x128xf32>
    %43 = vector.broadcast %23 : f32 to vector<1x8x128xf32>
    %44 = arith.select %34, %43, %42 : vector<1x8x128xi1>, vector<1x8x128xf32>
    %c0_13 = arith.constant 0 : index
    %c0_14 = arith.constant 0 : index
    %c0_15 = arith.constant 0 : index
    %45 = vector.load %arg4[%c0_13, %c0_14, %c0_15] : memref<1x8x128xf32, #tpu.memory_space<vmem>>, vector<1x8x128xf32>
    tpu.vector_store %arg4[%c0_13, %c0_14, %c0_15], %44 {strides = array<i32>} : memref<1x8x128xf32, #tpu.memory_space<vmem>>, vector<1x8x128xf32>,
    return
  }
  func.func @transform_0(%arg0: i32) -> (i32, i32) {
    %c0_i32 = arith.constant 0 : i32
    %c0_i32_0 = arith.constant 0 : i32
    return %arg0, %c0_i32 : i32, i32
  }
  func.func @transform_1(%arg0: i32) -> (i32, i32) {
    %c0_i32 = arith.constant 0 : i32
    %c0_i32_0 = arith.constant 0 : i32
    return %arg0, %c0_i32 : i32, i32
  }
  func.func @transform_2(%arg0: i32) -> (i32, i32) {
    %c0_i32 = arith.constant 0 : i32
    %c0_i32_0 = arith.constant 0 : i32
    return %arg0, %c0_i32 : i32, i32
  }
  func.func @transform_3(%arg0: i32) -> (i32, i32, i32) {
    %c0_i32 = arith.constant 0 : i32
    %c0_i32_0 = arith.constant 0 : i32
    %c0_i32_1 = arith.constant 0 : i32
    return %arg0, %c0_i32, %c0_i32_0 : i32, i32, i32
  }
}

</mosaic_0001>

<llo_original>
// kernel: model_forward.4
$region0: #{model_forward.4}
  #allocation0 [shape = 'u32[]', space=smem, size = 0x4, offset = 0x4, fixed_abs, tag = 'smem constant byte address 0x4 - core index']
  #allocation1 [shape = 'u32[144,128]{1,0:T(1,128)}', space=vmem, size = 0x12000, scoped, tag = 'internal scratch']
  %s0 = inlined_call_operand.vmem [shape: f32[128,32], index: 0, kind: input, shape index: {}]
  %s1 = inlined_call_operand.vmem [shape: f32[32,32], index: 1, kind: input, shape index: {}]
  %s2 = inlined_call_operand.vmem [shape: f32[1,32], index: 2, kind: input, shape index: {}]
  %s3 = inlined_call_operand.vmem [shape: f32[128,32], index: 3, kind: output, shape index: {}]
  %s4 = sld [smem:[#allocation0]]
  $region22: #{model_forward.4} parent=0
    _
  %s6 = ssub.s32 1, %s4
  %s7 = scalar_select 0, %s6, %s4
  // Predicated region
  $region2: #{model_forward.4} parent=0 // pred_check
    _
  $region3: #{model_forward.4} parent=0 // pred_check_branch
    %9 = sbr.rel (0) target = $region5
  $region4: #{model_forward.4} parent=0 // pred_region
    _
  $region5: #{model_forward.4} parent=0 // pred_fallthru
    _
  // Predicated region
  $region6: #{model_forward.4} parent=0 // pred_check
    _
  $region7: #{model_forward.4} parent=0 // pred_check_branch
    %11 = sbr.rel (0) target = $region9
  $region8: #{model_forward.4} parent=0 // pred_region
    _
  $region9: #{model_forward.4} parent=0 // pred_fallthru
    _
  // Predicated region
  $region10: #{model_forward.4} parent=0 // pred_check
    _
  $region11: #{model_forward.4} parent=0 // pred_check_branch
    %13 = sbr.rel (0) target = $region13
  $region12: #{model_forward.4} parent=0 // pred_region
    _
  $region13: #{model_forward.4} parent=0 // pred_fallthru
    _
  %v14 = vld [vmem:[%s0] sm:$0xff]
  %v15 = vld [vmem:[%s0 + $0x8] sm:$0xff]
  %v16 = vld [vmem:[%s0 + $0x10] sm:$0xff]
  %v17 = vld [vmem:[%s0 + $0x18] sm:$0xff]
  %v18 = vld [vmem:[%s0 + $0x20] sm:$0xff]
  %v19 = vld [vmem:[%s0 + $0x28] sm:$0xff]
  %v20 = vld [vmem:[%s0 + $0x30] sm:$0xff]
  %v21 = vld [vmem:[%s0 + $0x38] sm:$0xff]
  %v22 = vld [vmem:[%s0 + $0x40] sm:$0xff]
  %v23 = vld [vmem:[%s0 + $0x48] sm:$0xff]
  %v24 = vld [vmem:[%s0 + $0x50] sm:$0xff]
  %v25 = vld [vmem:[%s0 + $0x58] sm:$0xff]
  %v26 = vld [vmem:[%s0 + $0x60] sm:$0xff]
  %v27 = vld [vmem:[%s0 + $0x68] sm:$0xff]
  %v28 = vld [vmem:[%s0 + $0x70] sm:$0xff]
  %v29 = vld [vmem:[%s0 + $0x78] sm:$0xff]
  %v30 = vld [vmem:[%s1] sm:$0xff]
  %v31 = vld [vmem:[%s1 + $0x8] sm:$0xff]
  %v32 = vld [vmem:[%s1 + $0x10] sm:$0xff]
  %v33 = vld [vmem:[%s1 + $0x18] sm:$0xff]
  %v34 = vld [vmem:[%s2] sm:$0x1]
  %v36 = vlaneseq
  %v37 = vshrl.u32 %v36, 7
  %v38 = vsub.s32 0, %v37
  %v39 = vrot.slane %v34, %v38
  %vm41 = vcmask 261120
  %v43 = vsel %vm41, %v14, 0
  %v46 = vsel %vm41, %v15, 0
  %v49 = vsel %vm41, %v16, 0
  %v52 = vsel %vm41, %v17, 0
  %v55 = vsel %vm41, %v18, 0
  %v58 = vsel %vm41, %v19, 0
  %v61 = vsel %vm41, %v20, 0
  %v64 = vsel %vm41, %v21, 0
  %v67 = vsel %vm41, %v22, 0
  %v70 = vsel %vm41, %v23, 0
  %v73 = vsel %vm41, %v24, 0
  %v76 = vsel %vm41, %v25, 0
  %v79 = vsel %vm41, %v26, 0
  %v82 = vsel %vm41, %v27, 0
  %v85 = vsel %vm41, %v28, 0
  %v88 = vsel %vm41, %v29, 0
  %90 = vmatprep.subr.mxu0 0.0
  %91 = vmatpush1.msra.mxu0 %v30
  %92 = vmatprep.subr.mxu0 0.0
  %93 = vmatpush1.msra.mxu0 %v31
  %94 = vmatprep.subr.mxu0 0.0
  %95 = vmatpush1.msra.mxu0 %v32
  %96 = vmatprep.subr.mxu0 0.0
  %97 = vmatpush1.msra.mxu0 %v33
  %98 = vmatprep.subr.mxu0 0.0
  %99 = vmatpush1.msra.mxu0 0.0
  %100 = vmatprep.subr.mxu0 0.0
  %101 = vmatpush1.msra.mxu0 0.0
  %102 = vmatprep.subr.mxu0 0.0
  %103 = vmatpush1.msra.mxu0 0.0
  %104 = vmatprep.subr.mxu0 0.0
  %105 = vmatpush1.msra.mxu0 0.0
  %106 = vmatprep.subr.mxu0 0.0
  %107 = vmatpush1.msra.mxu0 0.0
  %108 = vmatprep.subr.mxu0 0.0
  %109 = vmatpush1.msra.mxu0 0.0
  %110 = vmatprep.subr.mxu0 0.0
  %111 = vmatpush1.msra.mxu0 0.0
  %112 = vmatprep.subr.mxu0 0.0
  %113 = vmatpush1.msra.mxu0 0.0
  %114 = vmatprep.subr.mxu0 0.0
  %115 = vmatpush1.msra.mxu0 0.0
  %116 = vmatprep.subr.mxu0 0.0
  %117 = vmatpush1.msra.mxu0 0.0
  %118 = vmatprep.subr.mxu0 0.0
  %119 = vmatpush1.msra.mxu0 0.0
  %120 = vmatprep.subr.mxu0 0.0
  %121 = vmatpush1.msra.mxu0 0.0
  %122 = vmatprep.subr.mxu0 0.0
  %123 = vmatpush1.msra.mxu0 0.0
  %124 = vmatprep.subr.mxu0 0.0
  %125 = vmatpush1.msra.mxu0 0.0
  %126 = vmatprep.subr.mxu0 0.0
  %127 = vmatpush1.msra.mxu0 0.0
  %128 = vmatprep.subr.mxu0 0.0
  %129 = vmatpush1.msra.mxu0 0.0
  %130 = vmatprep.subr.mxu0 0.0
  %131 = vmatpush1.msra.mxu0 0.0
  %132 = vmatprep.subr.mxu0 0.0
  %133 = vmatpush1.msra.mxu0 0.0
  %134 = vmatprep.subr.mxu0 0.0
  %135 = vmatpush1.msra.mxu0 0.0
  %136 = vmatprep.subr.mxu0 0.0
  %137 = vmatpush1.msra.mxu0 0.0
  %138 = vmatprep.subr.mxu0 0.0
  %139 = vmatpush1.msra.mxu0 0.0
  %140 = vmatprep.subr.mxu0 0.0
  %141 = vmatpush1.msra.mxu0 0.0
  %142 = vmatprep.subr.mxu0 0.0
  %143 = vmatpush1.msra.mxu0 0.0
  %144 = vmatprep.subr.mxu0 0.0
  %145 = vmatpush1.msra.mxu0 0.0
  %146 = vmatprep.subr.mxu0 0.0
  %147 = vmatpush1.msra.mxu0 0.0
  %148 = vmatprep.subr.mxu0 0.0
  %149 = vmatpush1.msra.mxu0 0.0
  %150 = vmatprep.subr.mxu0 0.0
  %151 = vmatpush1.msra.mxu0 0.0
  %152 = vmatprep.subr.mxu0 0.0
  %153 = vmatpush1.msra.mxu0 0.0
  %154 = vmatprep.mubr.f32.mxu0 0.0
  %155 = vmatmul.mubr.f32.gmra.mrb[0].mxu0 %v43
  %v156 = vpop.f32.mrb[0].mxu0
  %v157 = vadd.f32 %v39, %v156
  %v158 = vpop.f32.mrb[0].mxu0
  %159 = vmatprep.mubr.f32.mxu0 0.0
  %160 = vmatmul.mubr.f32.gmra.mrb[0].mxu0 %v46
  %v161 = vpop.f32.mrb[0].mxu0
  %v162 = vadd.f32 %v39, %v161
  %v163 = vpop.f32.mrb[0].mxu0
  %164 = vmatprep.mubr.f32.mxu0 0.0
  %165 = vmatmul.mubr.f32.gmra.mrb[0].mxu0 %v49
  %v166 = vpop.f32.mrb[0].mxu0
  %v167 = vadd.f32 %v39, %v166
  %v168 = vpop.f32.mrb[0].mxu0
  %169 = vmatprep.mubr.f32.mxu0 0.0
  %170 = vmatmul.mubr.f32.gmra.mrb[0].mxu0 %v52
  %v171 = vpop.f32.mrb[0].mxu0
  %v172 = vadd.f32 %v39, %v171
  %v173 = vpop.f32.mrb[0].mxu0
  %174 = vmatprep.mubr.f32.mxu0 0.0
  %175 = vmatmul.mubr.f32.gmra.mrb[0].mxu0 %v55
  %v176 = vpop.f32.mrb[0].mxu0
  %v177 = vadd.f32 %v39, %v176
  %v178 = vpop.f32.mrb[0].mxu0
  %179 = vmatprep.mubr.f32.mxu0 0.0
  %180 = vmatmul.mubr.f32.gmra.mrb[0].mxu0 %v58
  %v181 = vpop.f32.mrb[0].mxu0
  %v182 = vadd.f32 %v39, %v181
  %v183 = vpop.f32.mrb[0].mxu0
  %184 = vmatprep.mubr.f32.mxu0 0.0
  %185 = vmatmul.mubr.f32.gmra.mrb[0].mxu0 %v61
  %v186 = vpop.f32.mrb[0].mxu0
  %v187 = vadd.f32 %v39, %v186
  %v188 = vpop.f32.mrb[0].mxu0
  %189 = vmatprep.mubr.f32.mxu0 0.0
  %190 = vmatmul.mubr.f32.gmra.mrb[0].mxu0 %v64
  %v191 = vpop.f32.mrb[0].mxu0
  %v192 = vadd.f32 %v39, %v191
  %v193 = vpop.f32.mrb[0].mxu0
  %194 = vmatprep.mubr.f32.mxu0 0.0
  %195 = vmatmul.mubr.f32.gmra.mrb[0].mxu0 %v67
  %v196 = vpop.f32.mrb[0].mxu0
  %v197 = vadd.f32 %v39, %v196
  %v198 = vpop.f32.mrb[0].mxu0
  %199 = vmatprep.mubr.f32.mxu0 0.0
  %200 = vmatmul.mubr.f32.gmra.mrb[0].mxu0 %v70
  %v201 = vpop.f32.mrb[0].mxu0
  %v202 = vadd.f32 %v39, %v201
  %v203 = vpop.f32.mrb[0].mxu0
  %204 = vmatprep.mubr.f32.mxu0 0.0
  %205 = vmatmul.mubr.f32.gmra.mrb[0].mxu0 %v73
  %v206 = vpop.f32.mrb[0].mxu0
  %v207 = vadd.f32 %v39, %v206
  %v208 = vpop.f32.mrb[0].mxu0
  %209 = vmatprep.mubr.f32.mxu0 0.0
  %210 = vmatmul.mubr.f32.gmra.mrb[0].mxu0 %v76
  %v211 = vpop.f32.mrb[0].mxu0
  %v212 = vadd.f32 %v39, %v211
  %v213 = vpop.f32.mrb[0].mxu0
  %214 = vmatprep.mubr.f32.mxu0 0.0
  %215 = vmatmul.mubr.f32.gmra.mrb[0].mxu0 %v79
  %v216 = vpop.f32.mrb[0].mxu0
  %v217 = vadd.f32 %v39, %v216
  %v218 = vpop.f32.mrb[0].mxu0
  %219 = vmatprep.mubr.f32.mxu0 0.0
  %220 = vmatmul.mubr.f32.gmra.mrb[0].mxu0 %v82
  %v221 = vpop.f32.mrb[0].mxu0
  %v222 = vadd.f32 %v39, %v221
  %v223 = vpop.f32.mrb[0].mxu0
  %224 = vmatprep.mubr.f32.mxu0 0.0
  %225 = vmatmul.mubr.f32.gmra.mrb[0].mxu0 %v85
  %v226 = vpop.f32.mrb[0].mxu0
  %v227 = vadd.f32 %v39, %v226
  %v228 = vpop.f32.mrb[0].mxu0
  %229 = vmatprep.mubr.f32.mxu0 0.0
  %230 = vmatmul.mubr.f32.gmra.mrb[0].mxu0 %v88
  %v231 = vpop.f32.mrb[0].mxu0
  %v232 = vadd.f32 %v39, %v231
  %v233 = vpop.f32.mrb[0].mxu0
  %234 = vdwg.mxu0
  %v235 = vmax.f32 %v157, 0.0
  %v236 = vmax.f32 %v162, 0.0
  %v237 = vmax.f32 %v167, 0.0
  %v238 = vmax.f32 %v172, 0.0
  %v239 = vmax.f32 %v177, 0.0
  %v240 = vmax.f32 %v182, 0.0
  %v241 = vmax.f32 %v187, 0.0
  %v242 = vmax.f32 %v192, 0.0
  %v243 = vmax.f32 %v197, 0.0
  %v244 = vmax.f32 %v202, 0.0
  %v245 = vmax.f32 %v207, 0.0
  %v246 = vmax.f32 %v212, 0.0
  %v247 = vmax.f32 %v217, 0.0
  %v248 = vmax.f32 %v222, 0.0
  %v249 = vmax.f32 %v227, 0.0
  %v250 = vmax.f32 %v232, 0.0
  %v251 = vmul.f32 %v235, %v235
  %v252 = vmul.f32 %v236, %v236
  %v253 = vmul.f32 %v237, %v237
  %v254 = vmul.f32 %v238, %v238
  %v255 = vmul.f32 %v239, %v239
  %v256 = vmul.f32 %v240, %v240
  %v257 = vmul.f32 %v241, %v241
  %v258 = vmul.f32 %v242, %v242
  %v259 = vmul.f32 %v243, %v243
  %v260 = vmul.f32 %v244, %v244
  %v261 = vmul.f32 %v245, %v245
  %v262 = vmul.f32 %v246, %v246
  %v263 = vmul.f32 %v247, %v247
  %v264 = vmul.f32 %v248, %v248
  %v265 = vmul.f32 %v249, %v249
  %v266 = vmul.f32 %v250, %v250
  %v267 = vsel %vm41, %v251, 0.0
  %268 = vadd.xlane.f32.xlu0 %v267
  %v269 = vpop.xlane.xlu0 %268
  %v270 = vsel %vm41, %v252, 0.0
  %271 = vadd.xlane.f32.xlu0 %v270
  %v272 = vpop.xlane.xlu0 %271
  %v273 = vsel %vm41, %v253, 0.0
  %274 = vadd.xlane.f32.xlu0 %v273
  %v275 = vpop.xlane.xlu0 %274
  %v276 = vsel %vm41, %v254, 0.0
  %277 = vadd.xlane.f32.xlu0 %v276
  %v278 = vpop.xlane.xlu0 %277
  %v279 = vsel %vm41, %v255, 0.0
  %280 = vadd.xlane.f32.xlu0 %v279
  %v281 = vpop.xlane.xlu0 %280
  %v282 = vsel %vm41, %v256, 0.0
  %283 = vadd.xlane.f32.xlu0 %v282
  %v284 = vpop.xlane.xlu0 %283
  %v285 = vsel %vm41, %v257, 0.0
  %286 = vadd.xlane.f32.xlu0 %v285
  %v287 = vpop.xlane.xlu0 %286
  %v288 = vsel %vm41, %v258, 0.0
  %289 = vadd.xlane.f32.xlu0 %v288
  %v290 = vpop.xlane.xlu0 %289
  %v291 = vsel %vm41, %v259, 0.0
  %292 = vadd.xlane.f32.xlu0 %v291
  %v293 = vpop.xlane.xlu0 %292
  %v294 = vsel %vm41, %v260, 0.0
  %295 = vadd.xlane.f32.xlu0 %v294
  %v296 = vpop.xlane.xlu0 %295
  %v297 = vsel %vm41, %v261, 0.0
  %298 = vadd.xlane.f32.xlu0 %v297
  %v299 = vpop.xlane.xlu0 %298
  %v300 = vsel %vm41, %v262, 0.0
  %301 = vadd.xlane.f32.xlu0 %v300
  %v302 = vpop.xlane.xlu0 %301
  %v303 = vsel %vm41, %v263, 0.0
  %304 = vadd.xlane.f32.xlu0 %v303
  %v305 = vpop.xlane.xlu0 %304
  %v306 = vsel %vm41, %v264, 0.0
  %307 = vadd.xlane.f32.xlu0 %v306
  %v308 = vpop.xlane.xlu0 %307
  %v309 = vsel %vm41, %v265, 0.0
  %310 = vadd.xlane.f32.xlu0 %v309
  %v311 = vpop.xlane.xlu0 %310
  %v312 = vsel %vm41, %v266, 0.0
  %313 = vadd.xlane.f32.xlu0 %v312
  %v314 = vpop.xlane.xlu0 %313
  %v315 = vadd.f32 %v269, 1e-12
  %v316 = vadd.f32 %v272, 1e-12
  %v317 = vadd.f32 %v275, 1e-12
  %v318 = vadd.f32 %v278, 1e-12
  %v319 = vadd.f32 %v281, 1e-12
  %v320 = vadd.f32 %v284, 1e-12
  %v321 = vadd.f32 %v287, 1e-12
  %v322 = vadd.f32 %v290, 1e-12
  %v323 = vadd.f32 %v293, 1e-12
  %v324 = vadd.f32 %v296, 1e-12
  %v325 = vadd.f32 %v299, 1e-12
  %v326 = vadd.f32 %v302, 1e-12
  %v327 = vadd.f32 %v305, 1e-12
  %v328 = vadd.f32 %v308, 1e-12
  %v329 = vadd.f32 %v311, 1e-12
  %v330 = vadd.f32 %v314, 1e-12
  %v331 = vrsqrt.pop %v315
  %v332 = vrsqrt.pop %v316
  %v333 = vrsqrt.pop %v317
  %v334 = vrsqrt.pop %v318
  %v335 = vrsqrt.pop %v319
  %v336 = vrsqrt.pop %v320
  %v337 = vrsqrt.pop %v321
  %v338 = vrsqrt.pop %v322
  %v339 = vrsqrt.pop %v323
  %v340 = vrsqrt.pop %v324
  %v341 = vrsqrt.pop %v325
  %v342 = vrsqrt.pop %v326
  %v343 = vrsqrt.pop %v327
  %v344 = vrsqrt.pop %v328
  %v345 = vrsqrt.pop %v329
  %v346 = vrsqrt.pop %v330
  %v347 = vmul.f32 %v235, %v331
  %v348 = vmul.f32 %v236, %v332
  %v349 = vmul.f32 %v237, %v333
  %v350 = vmul.f32 %v238, %v334
  %v351 = vmul.f32 %v239, %v335
  %v352 = vmul.f32 %v240, %v336
  %v353 = vmul.f32 %v241, %v337
  %v354 = vmul.f32 %v242, %v338
  %v355 = vmul.f32 %v243, %v339
  %v356 = vmul.f32 %v244, %v340
  %v357 = vmul.f32 %v245, %v341
  %v358 = vmul.f32 %v246, %v342
  %v359 = vmul.f32 %v247, %v343
  %v360 = vmul.f32 %v248, %v344
  %v361 = vmul.f32 %v249, %v345
  %v362 = vmul.f32 %v250, %v346
  %363 = vst.msk [vmem:[%s3] sm:$0xff] %vm41, %v347
  %364 = vst.msk [vmem:[%s3 + $0x8] sm:$0xff] %vm41, %v348
  %365 = vst.msk [vmem:[%s3 + $0x10] sm:$0xff] %vm41, %v349
  %366 = vst.msk [vmem:[%s3 + $0x18] sm:$0xff] %vm41, %v350
  %367 = vst.msk [vmem:[%s3 + $0x20] sm:$0xff] %vm41, %v351
  %368 = vst.msk [vmem:[%s3 + $0x28] sm:$0xff] %vm41, %v352
  %369 = vst.msk [vmem:[%s3 + $0x30] sm:$0xff] %vm41, %v353
  %370 = vst.msk [vmem:[%s3 + $0x38] sm:$0xff] %vm41, %v354
  %371 = vst.msk [vmem:[%s3 + $0x40] sm:$0xff] %vm41, %v355
  %372 = vst.msk [vmem:[%s3 + $0x48] sm:$0xff] %vm41, %v356
  %373 = vst.msk [vmem:[%s3 + $0x50] sm:$0xff] %vm41, %v357
  %374 = vst.msk [vmem:[%s3 + $0x58] sm:$0xff] %vm41, %v358
  %375 = vst.msk [vmem:[%s3 + $0x60] sm:$0xff] %vm41, %v359
  %376 = vst.msk [vmem:[%s3 + $0x68] sm:$0xff] %vm41, %v360
  %377 = vst.msk [vmem:[%s3 + $0x70] sm:$0xff] %vm41, %v361
  %378 = vst.msk [vmem:[%s3 + $0x78] sm:$0xff] %vm41, %v362
  // Predicated region
  $region14: #{model_forward.4} parent=0 // pred_check
    _
  $region15: #{model_forward.4} parent=0 // pred_check_branch
    %380 = sbr.rel (0) target = $region17
  $region16: #{model_forward.4} parent=0 // pred_region
    _
  $region17: #{model_forward.4} parent=0 // pred_fallthru
    _
  // Predicated region
  $region18: #{model_forward.4} parent=0 // pred_check
    _
  $region19: #{model_forward.4} parent=0 // pred_check_branch
    %382 = sbr.rel (0) target = $region21
  $region20: #{model_forward.4} parent=0 // pred_region
    _
  $region21: #{model_forward.4} parent=0 // pred_fallthru
    _

// kernel: model_forward.5
$region0: #{model_forward.5}
  #allocation0 [shape = 'u32[]', space=smem, size = 0x4, offset = 0x4, fixed_abs, tag = 'smem constant byte address 0x4 - core index']
  #allocation1 [shape = 'u32[144,128]{1,0:T(1,128)}', space=vmem, size = 0x12000, scoped, tag = 'internal scratch']
  %s0 = inlined_call_operand.vmem [shape: f32[128,32], index: 0, kind: input, shape index: {}, may-alias: {0,1}]
  %s1 = inlined_call_operand.vmem [shape: f32[128,32], index: 1, kind: input, shape index: {}, may-alias: {0,1}]
  %s2 = inlined_call_operand.vmem [shape: f32[128,128], index: 2, kind: input, shape index: {}]
  %s3 = inlined_call_operand.vmem [shape: f32[1,1,8,128], index: 3, kind: output, shape index: {}]
  %s4 = sld [smem:[#allocation0]]
  $region22: #{model_forward.5} parent=0
    _
  %s6 = ssub.s32 1, %s4
  %s7 = scalar_select 0, %s6, %s4
  // Predicated region
  $region2: #{model_forward.5} parent=0 // pred_check
    _
  $region3: #{model_forward.5} parent=0 // pred_check_branch
    %9 = sbr.rel (0) target = $region5
  $region4: #{model_forward.5} parent=0 // pred_region
    _
  $region5: #{model_forward.5} parent=0 // pred_fallthru
    _
  // Predicated region
  $region6: #{model_forward.5} parent=0 // pred_check
    _
  $region7: #{model_forward.5} parent=0 // pred_check_branch
    %11 = sbr.rel (0) target = $region9
  $region8: #{model_forward.5} parent=0 // pred_region
    _
  $region9: #{model_forward.5} parent=0 // pred_fallthru
    _
  // Predicated region
  $region10: #{model_forward.5} parent=0 // pred_check
    _
  $region11: #{model_forward.5} parent=0 // pred_check_branch
    %13 = sbr.rel (0) target = $region13
  $region12: #{model_forward.5} parent=0 // pred_region
    _
  $region13: #{model_forward.5} parent=0 // pred_fallthru
    _
  %v14 = vld [vmem:[%s0] sm:$0xff]
  %v15 = vld [vmem:[%s0 + $0x8] sm:$0xff]
  %v16 = vld [vmem:[%s0 + $0x10] sm:$0xff]
  %v17 = vld [vmem:[%s0 + $0x18] sm:$0xff]
  %v18 = vld [vmem:[%s0 + $0x20] sm:$0xff]
  %v19 = vld [vmem:[%s0 + $0x28] sm:$0xff]
  %v20 = vld [vmem:[%s0 + $0x30] sm:$0xff]
  %v21 = vld [vmem:[%s0 + $0x38] sm:$0xff]
  %v22 = vld [vmem:[%s0 + $0x40] sm:$0xff]
  %v23 = vld [vmem:[%s0 + $0x48] sm:$0xff]
  %v24 = vld [vmem:[%s0 + $0x50] sm:$0xff]
  %v25 = vld [vmem:[%s0 + $0x58] sm:$0xff]
  %v26 = vld [vmem:[%s0 + $0x60] sm:$0xff]
  %v27 = vld [vmem:[%s0 + $0x68] sm:$0xff]
  %v28 = vld [vmem:[%s0 + $0x70] sm:$0xff]
  %v29 = vld [vmem:[%s0 + $0x78] sm:$0xff]
  %v30 = vld [vmem:[%s1] sm:$0xff]
  %v31 = vld [vmem:[%s1 + $0x8] sm:$0xff]
  %v32 = vld [vmem:[%s1 + $0x10] sm:$0xff]
  %v33 = vld [vmem:[%s1 + $0x18] sm:$0xff]
  %v34 = vld [vmem:[%s1 + $0x20] sm:$0xff]
  %v35 = vld [vmem:[%s1 + $0x28] sm:$0xff]
  %v36 = vld [vmem:[%s1 + $0x30] sm:$0xff]
  %v37 = vld [vmem:[%s1 + $0x38] sm:$0xff]
  %v38 = vld [vmem:[%s1 + $0x40] sm:$0xff]
  %v39 = vld [vmem:[%s1 + $0x48] sm:$0xff]
  %v40 = vld [vmem:[%s1 + $0x50] sm:$0xff]
  %v41 = vld [vmem:[%s1 + $0x58] sm:$0xff]
  %v42 = vld [vmem:[%s1 + $0x60] sm:$0xff]
  %v43 = vld [vmem:[%s1 + $0x68] sm:$0xff]
  %v44 = vld [vmem:[%s1 + $0x70] sm:$0xff]
  %v45 = vld [vmem:[%s1 + $0x78] sm:$0xff]
  %v46 = vld [vmem:[%s2] sm:$0xff]
  %v47 = vld [vmem:[%s2 + $0x8] sm:$0xff]
  %v48 = vld [vmem:[%s2 + $0x10] sm:$0xff]
  %v49 = vld [vmem:[%s2 + $0x18] sm:$0xff]
  %v50 = vld [vmem:[%s2 + $0x20] sm:$0xff]
  %v51 = vld [vmem:[%s2 + $0x28] sm:$0xff]
  %v52 = vld [vmem:[%s2 + $0x30] sm:$0xff]
  %v53 = vld [vmem:[%s2 + $0x38] sm:$0xff]
  %v54 = vld [vmem:[%s2 + $0x40] sm:$0xff]
  %v55 = vld [vmem:[%s2 + $0x48] sm:$0xff]
  %v56 = vld [vmem:[%s2 + $0x50] sm:$0xff]
  %v57 = vld [vmem:[%s2 + $0x58] sm:$0xff]
  %v58 = vld [vmem:[%s2 + $0x60] sm:$0xff]
  %v59 = vld [vmem:[%s2 + $0x68] sm:$0xff]
  %v60 = vld [vmem:[%s2 + $0x70] sm:$0xff]
  %v61 = vld [vmem:[%s2 + $0x78] sm:$0xff]
  %vm62 = vcmask 261120
  %v64 = vsel %vm62, %v14, 0
  %v67 = vsel %vm62, %v15, 0
  %v70 = vsel %vm62, %v16, 0
  %v73 = vsel %vm62, %v17, 0
  %v76 = vsel %vm62, %v18, 0
  %v79 = vsel %vm62, %v19, 0
  %v82 = vsel %vm62, %v20, 0
  %v85 = vsel %vm62, %v21, 0
  %v88 = vsel %vm62, %v22, 0
  %v91 = vsel %vm62, %v23, 0
  %v94 = vsel %vm62, %v24, 0
  %v97 = vsel %vm62, %v25, 0
  %v100 = vsel %vm62, %v26, 0
  %v103 = vsel %vm62, %v27, 0
  %v106 = vsel %vm62, %v28, 0
  %v109 = vsel %vm62, %v29, 0
  %v112 = vsel %vm62, %v30, 0
  %v115 = vsel %vm62, %v31, 0
  %v118 = vsel %vm62, %v32, 0
  %v121 = vsel %vm62, %v33, 0
  %v124 = vsel %vm62, %v34, 0
  %v127 = vsel %vm62, %v35, 0
  %v130 = vsel %vm62, %v36, 0
  %v133 = vsel %vm62, %v37, 0
  %v136 = vsel %vm62, %v38, 0
  %v139 = vsel %vm62, %v39, 0
  %v142 = vsel %vm62, %v40, 0
  %v145 = vsel %vm62, %v41, 0
  %v148 = vsel %vm62, %v42, 0
  %v151 = vsel %vm62, %v43, 0
  %v154 = vsel %vm62, %v44, 0
  %v157 = vsel %vm62, %v45, 0
  %159 = vmatprep.subr.mxu0 0.0
  %160 = vmatpush1.xpose.msra.mxu0 %v112
  %161 = vmatprep.subr.mxu0 0.0
  %162 = vmatpush1.xpose.msra.mxu0 %v115
  %163 = vmatprep.subr.mxu0 0.0
  %164 = vmatpush1.xpose.msra.mxu0 %v118
  %165 = vmatprep.subr.mxu0 0.0
  %166 = vmatpush1.xpose.msra.mxu0 %v121
  %167 = vmatprep.subr.mxu0 0.0
  %168 = vmatpush1.xpose.msra.mxu0 %v124
  %169 = vmatprep.subr.mxu0 0.0
  %170 = vmatpush1.xpose.msra.mxu0 %v127
  %171 = vmatprep.subr.mxu0 0.0
  %172 = vmatpush1.xpose.msra.mxu0 %v130
  %173 = vmatprep.subr.mxu0 0.0
  %174 = vmatpush1.xpose.msra.mxu0 %v133
  %175 = vmatprep.subr.mxu0 0.0
  %176 = vmatpush1.xpose.msra.mxu0 %v136
  %177 = vmatprep.subr.mxu0 0.0
  %178 = vmatpush1.xpose.msra.mxu0 %v139
  %179 = vmatprep.subr.mxu0 0.0
  %180 = vmatpush1.xpose.msra.mxu0 %v142
  %181 = vmatprep.subr.mxu0 0.0
  %182 = vmatpush1.xpose.msra.mxu0 %v145
  %183 = vmatprep.subr.mxu0 0.0
  %184 = vmatpush1.xpose.msra.mxu0 %v148
  %185 = vmatprep.subr.mxu0 0.0
  %186 = vmatpush1.xpose.msra.mxu0 %v151
  %187 = vmatprep.subr.mxu0 0.0
  %188 = vmatpush1.xpose.msra.mxu0 %v154
  %189 = vmatprep.subr.mxu0 0.0
  %190 = vmatpush1.xpose.msra.mxu0 %v157
  %191 = vmatprep.subr.mxu0 0.0
  %192 = vmatpush1.xpose.msra.mxu0 0.0
  %193 = vmatprep.subr.mxu0 0.0
  %194 = vmatpush1.xpose.msra.mxu0 0.0
  %195 = vmatprep.subr.mxu0 0.0
  %196 = vmatpush1.xpose.msra.mxu0 0.0
  %197 = vmatprep.subr.mxu0 0.0
  %198 = vmatpush1.xpose.msra.mxu0 0.0
  %199 = vmatprep.subr.mxu0 0.0
  %200 = vmatpush1.xpose.msra.mxu0 0.0
  %201 = vmatprep.subr.mxu0 0.0
  %202 = vmatpush1.xpose.msra.mxu0 0.0
  %203 = vmatprep.subr.mxu0 0.0
  %204 = vmatpush1.xpose.msra.mxu0 0.0
  %205 = vmatprep.subr.mxu0 0.0
  %206 = vmatpush1.xpose.msra.mxu0 0.0
  %207 = vmatprep.subr.mxu0 0.0
  %208 = vmatpush1.xpose.msra.mxu0 0.0
  %209 = vmatprep.subr.mxu0 0.0
  %210 = vmatpush1.xpose.msra.mxu0 0.0
  %211 = vmatprep.subr.mxu0 0.0
  %212 = vmatpush1.xpose.msra.mxu0 0.0
  %213 = vmatprep.subr.mxu0 0.0
  %214 = vmatpush1.xpose.msra.mxu0 0.0
  %215 = vmatprep.subr.mxu0 0.0
  %216 = vmatpush1.xpose.msra.mxu0 0.0
  %217 = vmatprep.subr.mxu0 0.0
  %218 = vmatpush1.xpose.msra.mxu0 0.0
  %219 = vmatprep.subr.mxu0 0.0
  %220 = vmatpush1.xpose.msra.mxu0 0.0
  %221 = vmatprep.subr.mxu0 0.0
  %222 = vmatpush1.xpose.msra.mxu0 0.0
  %223 = vmatprep.mubr.f32.mxu0 0.0
  %224 = vmatmul.mubr.f32.gmra.mrb[0].mxu0 %v64
  %v225 = vpop.f32.mrb[0].mxu0
  %v226 = vadd.f32 0.0, %v225
  %v227 = vpop.f32.mrb[0].mxu0
  %228 = vmatprep.mubr.f32.mxu0 0.0
  %229 = vmatmul.mubr.f32.gmra.mrb[0].mxu0 %v67
  %v230 = vpop.f32.mrb[0].mxu0
  %v231 = vadd.f32 0.0, %v230
  %v232 = vpop.f32.mrb[0].mxu0
  %233 = vmatprep.mubr.f32.mxu0 0.0
  %234 = vmatmul.mubr.f32.gmra.mrb[0].mxu0 %v70
  %v235 = vpop.f32.mrb[0].mxu0
  %v236 = vadd.f32 0.0, %v235
  %v237 = vpop.f32.mrb[0].mxu0
  %238 = vmatprep.mubr.f32.mxu0 0.0
  %239 = vmatmul.mubr.f32.gmra.mrb[0].mxu0 %v73
  %v240 = vpop.f32.mrb[0].mxu0
  %v241 = vadd.f32 0.0, %v240
  %v242 = vpop.f32.mrb[0].mxu0
  %243 = vmatprep.mubr.f32.mxu0 0.0
  %244 = vmatmul.mubr.f32.gmra.mrb[0].mxu0 %v76
  %v245 = vpop.f32.mrb[0].mxu0
  %v246 = vadd.f32 0.0, %v245
  %v247 = vpop.f32.mrb[0].mxu0
  %248 = vmatprep.mubr.f32.mxu0 0.0
  %249 = vmatmul.mubr.f32.gmra.mrb[0].mxu0 %v79
  %v250 = vpop.f32.mrb[0].mxu0
  %v251 = vadd.f32 0.0, %v250
  %v252 = vpop.f32.mrb[0].mxu0
  %253 = vmatprep.mubr.f32.mxu0 0.0
  %254 = vmatmul.mubr.f32.gmra.mrb[0].mxu0 %v82
  %v255 = vpop.f32.mrb[0].mxu0
  %v256 = vadd.f32 0.0, %v255
  %v257 = vpop.f32.mrb[0].mxu0
  %258 = vmatprep.mubr.f32.mxu0 0.0
  %259 = vmatmul.mubr.f32.gmra.mrb[0].mxu0 %v85
  %v260 = vpop.f32.mrb[0].mxu0
  %v261 = vadd.f32 0.0, %v260
  %v262 = vpop.f32.mrb[0].mxu0
  %263 = vmatprep.mubr.f32.mxu0 0.0
  %264 = vmatmul.mubr.f32.gmra.mrb[0].mxu0 %v88
  %v265 = vpop.f32.mrb[0].mxu0
  %v266 = vadd.f32 0.0, %v265
  %v267 = vpop.f32.mrb[0].mxu0
  %268 = vmatprep.mubr.f32.mxu0 0.0
  %269 = vmatmul.mubr.f32.gmra.mrb[0].mxu0 %v91
  %v270 = vpop.f32.mrb[0].mxu0
  %v271 = vadd.f32 0.0, %v270
  %v272 = vpop.f32.mrb[0].mxu0
  %273 = vmatprep.mubr.f32.mxu0 0.0
  %274 = vmatmul.mubr.f32.gmra.mrb[0].mxu0 %v94
  %v275 = vpop.f32.mrb[0].mxu0
  %v276 = vadd.f32 0.0, %v275
  %v277 = vpop.f32.mrb[0].mxu0
  %278 = vmatprep.mubr.f32.mxu0 0.0
  %279 = vmatmul.mubr.f32.gmra.mrb[0].mxu0 %v97
  %v280 = vpop.f32.mrb[0].mxu0
  %v281 = vadd.f32 0.0, %v280
  %v282 = vpop.f32.mrb[0].mxu0
  %283 = vmatprep.mubr.f32.mxu0 0.0
  %284 = vmatmul.mubr.f32.gmra.mrb[0].mxu0 %v100
  %v285 = vpop.f32.mrb[0].mxu0
  %v286 = vadd.f32 0.0, %v285
  %v287 = vpop.f32.mrb[0].mxu0
  %288 = vmatprep.mubr.f32.mxu0 0.0
  %289 = vmatmul.mubr.f32.gmra.mrb[0].mxu0 %v103
  %v290 = vpop.f32.mrb[0].mxu0
  %v291 = vadd.f32 0.0, %v290
  %v292 = vpop.f32.mrb[0].mxu0
  %293 = vmatprep.mubr.f32.mxu0 0.0
  %294 = vmatmul.mubr.f32.gmra.mrb[0].mxu0 %v106
  %v295 = vpop.f32.mrb[0].mxu0
  %v296 = vadd.f32 0.0, %v295
  %v297 = vpop.f32.mrb[0].mxu0
  %298 = vmatprep.mubr.f32.mxu0 0.0
  %299 = vmatmul.mubr.f32.gmra.mrb[0].mxu0 %v109
  %v300 = vpop.f32.mrb[0].mxu0
  %v301 = vadd.f32 0.0, %v300
  %v302 = vpop.f32.mrb[0].mxu0
  %303 = vdwg.mxu0
  %vm304 = vcmp.ne.f32.partialorder %v46, 0.0
  %vm305 = vcmp.ne.f32.partialorder %v47, 0.0
  %vm306 = vcmp.ne.f32.partialorder %v48, 0.0
  %vm307 = vcmp.ne.f32.partialorder %v49, 0.0
  %vm308 = vcmp.ne.f32.partialorder %v50, 0.0
  %vm309 = vcmp.ne.f32.partialorder %v51, 0.0
  %vm310 = vcmp.ne.f32.partialorder %v52, 0.0
  %vm311 = vcmp.ne.f32.partialorder %v53, 0.0
  %vm312 = vcmp.ne.f32.partialorder %v54, 0.0
  %vm313 = vcmp.ne.f32.partialorder %v55, 0.0
  %vm314 = vcmp.ne.f32.partialorder %v56, 0.0
  %vm315 = vcmp.ne.f32.partialorder %v57, 0.0
  %vm316 = vcmp.ne.f32.partialorder %v58, 0.0
  %vm317 = vcmp.ne.f32.partialorder %v59, 0.0
  %vm318 = vcmp.ne.f32.partialorder %v60, 0.0
  %vm319 = vcmp.ne.f32.partialorder %v61, 0.0
  %v320 = vsub.f32 %v226, %v46
  %v321 = vsub.f32 %v231, %v47
  %v322 = vsub.f32 %v236, %v48
  %v323 = vsub.f32 %v241, %v49
  %v324 = vsub.f32 %v246, %v50
  %v325 = vsub.f32 %v251, %v51
  %v326 = vsub.f32 %v256, %v52
  %v327 = vsub.f32 %v261, %v53
  %v328 = vsub.f32 %v266, %v54
  %v329 = vsub.f32 %v271, %v55
  %v330 = vsub.f32 %v276, %v56
  %v331 = vsub.f32 %v281, %v57
  %v332 = vsub.f32 %v286, %v58
  %v333 = vsub.f32 %v291, %v59
  %v334 = vsub.f32 %v296, %v60
  %v335 = vsub.f32 %v301, %v61
  %v336 = vand.u32 2147483647, %v320
  %v337 = vand.u32 2147483647, %v321
  %v338 = vand.u32 2147483647, %v322
  %v339 = vand.u32 2147483647, %v323
  %v340 = vand.u32 2147483647, %v324
  %v341 = vand.u32 2147483647, %v325
  %v342 = vand.u32 2147483647, %v326
  %v343 = vand.u32 2147483647, %v327
  %v344 = vand.u32 2147483647, %v328
  %v345 = vand.u32 2147483647, %v329
  %v346 = vand.u32 2147483647, %v330
  %v347 = vand.u32 2147483647, %v331
  %v348 = vand.u32 2147483647, %v332
  %v349 = vand.u32 2147483647, %v333
  %v350 = vand.u32 2147483647, %v334
  %v351 = vand.u32 2147483647, %v335
  %v352 = vsel %vm304, %v336, 0.0
  %v353 = vsel %vm305, %v337, 0.0
  %v354 = vsel %vm306, %v338, 0.0
  %v355 = vsel %vm307, %v339, 0.0
  %v356 = vsel %vm308, %v340, 0.0
  %v357 = vsel %vm309, %v341, 0.0
  %v358 = vsel %vm310, %v342, 0.0
  %v359 = vsel %vm311, %v343, 0.0
  %v360 = vsel %vm312, %v344, 0.0
  %v361 = vsel %vm313, %v345, 0.0
  %v362 = vsel %vm314, %v346, 0.0
  %v363 = vsel %vm315, %v347, 0.0
  %v364 = vsel %vm316, %v348, 0.0
  %v365 = vsel %vm317, %v349, 0.0
  %v366 = vsel %vm318, %v350, 0.0
  %v367 = vsel %vm319, %v351, 0.0
  %v368 = vadd.f32 %v352, %v353
  %v369 = vadd.f32 %v368, %v354
  %v370 = vadd.f32 %v369, %v355
  %v371 = vadd.f32 %v370, %v356
  %v372 = vadd.f32 %v371, %v357
  %v373 = vadd.f32 %v372, %v358
  %v374 = vadd.f32 %v373, %v359
  %v375 = vadd.f32 %v374, %v360
  %v376 = vadd.f32 %v375, %v361
  %v377 = vadd.f32 %v376, %v362
  %v378 = vadd.f32 %v377, %v363
  %v379 = vadd.f32 %v378, %v364
  %v380 = vadd.f32 %v379, %v365
  %v381 = vadd.f32 %v380, %v366
  %v382 = vadd.f32 %v381, %v367
  %383 = vadd.xlane.f32.xlu0 %v382
  %v384 = vpop.xlane.xlu0 %383
  %v385 = vrot.slane %v384, 4
  %v386 = vadd.f32 %v384, %v385
  %v387 = vrot.slane %v386, 2
  %v388 = vadd.f32 %v386, %v387
  %v389 = vrot.slane %v388, 1
  %v390 = vadd.f32 %v388, %v389
  %s391 = vtos %v390
  %v392 = vsel %vm304, 1, 0
  %v393 = vsel %vm305, 1, 0
  %v394 = vsel %vm306, 1, 0
  %v395 = vsel %vm307, 1, 0
  %v396 = vsel %vm308, 1, 0
  %v397 = vsel %vm309, 1, 0
  %v398 = vsel %vm310, 1, 0
  %v399 = vsel %vm311, 1, 0
  %v400 = vsel %vm312, 1, 0
  %v401 = vsel %vm313, 1, 0
  %v402 = vsel %vm314, 1, 0
  %v403 = vsel %vm315, 1, 0
  %v404 = vsel %vm316, 1, 0
  %v405 = vsel %vm317, 1, 0
  %v406 = vsel %vm318, 1, 0
  %v407 = vsel %vm319, 1, 0
  %v408 = vcvt.s32.f32 %v392
  %v409 = vcvt.s32.f32 %v393
  %v410 = vcvt.s32.f32 %v394
  %v411 = vcvt.s32.f32 %v395
  %v412 = vcvt.s32.f32 %v396
  %v413 = vcvt.s32.f32 %v397
  %v414 = vcvt.s32.f32 %v398
  %v415 = vcvt.s32.f32 %v399
  %v416 = vcvt.s32.f32 %v400
  %v417 = vcvt.s32.f32 %v401
  %v418 = vcvt.s32.f32 %v402
  %v419 = vcvt.s32.f32 %v403
  %v420 = vcvt.s32.f32 %v404
  %v421 = vcvt.s32.f32 %v405
  %v422 = vcvt.s32.f32 %v406
  %v423 = vcvt.s32.f32 %v407
  %v424 = vadd.f32 %v408, %v409
  %v425 = vadd.f32 %v424, %v410
  %v426 = vadd.f32 %v425, %v411
  %v427 = vadd.f32 %v426, %v412
  %v428 = vadd.f32 %v427, %v413
  %v429 = vadd.f32 %v428, %v414
  %v430 = vadd.f32 %v429, %v415
  %v431 = vadd.f32 %v430, %v416
  %v432 = vadd.f32 %v431, %v417
  %v433 = vadd.f32 %v432, %v418
  %v434 = vadd.f32 %v433, %v419
  %v435 = vadd.f32 %v434, %v420
  %v436 = vadd.f32 %v435, %v421
  %v437 = vadd.f32 %v436, %v422
  %v438 = vadd.f32 %v437, %v423
  %439 = vadd.xlane.f32.xlu0 %v438
  %v440 = vpop.xlane.xlu0 %439
  %v441 = vrot.slane %v440, 4
  %v442 = vadd.f32 %v440, %v441
  %v443 = vrot.slane %v442, 2
  %v444 = vadd.f32 %v442, %v443
  %v445 = vrot.slane %v444, 1
  %v446 = vadd.f32 %v444, %v445
  %s447 = vtos %v446
  %v448 = vlaneseq
  %v449 = vshrl.u32 %v448, 7
  %v450 = vlaneseq
  %v451 = vand.u32 %v450, 127
  %vm452 = vcmp.eq.s32.totalorder %v449, 0
  %vm453 = vcmp.eq.s32.totalorder %v451, 0
  %vm454 = vmand %vm452, %vm453
  %vm455 = vcmp.eq.s32.totalorder %v451, 1
  %vm456 = vmand %vm452, %vm455
  %v457 = vstv %s447
  %v458 = vsel %vm456, %v457, 0.0
  %v459 = vstv %s391
  %v460 = vsel %vm454, %v459, %v458
  %461 = vst [vmem:[%s3] sm:$0xff] %v460
  // Predicated region
  $region14: #{model_forward.5} parent=0 // pred_check
    _
  $region15: #{model_forward.5} parent=0 // pred_check_branch
    %463 = sbr.rel (0) target = $region17
  $region16: #{model_forward.5} parent=0 // pred_region
    _
  $region17: #{model_forward.5} parent=0 // pred_fallthru
    _
  // Predicated region
  $region18: #{model_forward.5} parent=0 // pred_check
    _
  $region19: #{model_forward.5} parent=0 // pred_check_branch
    %465 = sbr.rel (0) target = $region21
  $region20: #{model_forward.5} parent=0 // pred_region
    _
  $region21: #{model_forward.5} parent=0 // pred_fallthru
    _

// kernel: model_forward.3
$region0: #{model_forward.3}
  #allocation0 [shape = 'u32[]', space=smem, size = 0x4, offset = 0x4, fixed_abs, tag = 'smem constant byte address 0x4 - core index']
  #allocation1 [shape = 'u32[144,128]{1,0:T(1,128)}', space=vmem, size = 0x12000, scoped, tag = 'internal scratch']
  %s0 = inlined_call_operand.vmem [shape: f32[16,128], index: 0, kind: input, shape index: {}]
  %s1 = inlined_call_operand.vmem [shape: s32[16,1], index: 1, kind: input, shape index: {}]
  %s2 = inlined_call_operand.vmem [shape: f32[16,1], index: 2, kind: input, shape index: {}]
  %s3 = inlined_call_operand.vmem [shape: f32[1,8,128], index: 3, kind: output, shape index: {}]
  %s4 = sld [smem:[#allocation0]]
  $region22: #{model_forward.3} parent=0
    _
  %s6 = ssub.s32 1, %s4
  %s7 = scalar_select 0, %s6, %s4
  // Predicated region
  $region2: #{model_forward.3} parent=0 // pred_check
    _
  $region3: #{model_forward.3} parent=0 // pred_check_branch
    %9 = sbr.rel (0) target = $region5
  $region4: #{model_forward.3} parent=0 // pred_region
    _
  $region5: #{model_forward.3} parent=0 // pred_fallthru
    _
  // Predicated region
  $region6: #{model_forward.3} parent=0 // pred_check
    _
  $region7: #{model_forward.3} parent=0 // pred_check_branch
    %11 = sbr.rel (0) target = $region9
  $region8: #{model_forward.3} parent=0 // pred_region
    _
  $region9: #{model_forward.3} parent=0 // pred_fallthru
    _
  // Predicated region
  $region10: #{model_forward.3} parent=0 // pred_check
    _
  $region11: #{model_forward.3} parent=0 // pred_check_branch
    %13 = sbr.rel (0) target = $region13
  $region12: #{model_forward.3} parent=0 // pred_region
    _
  $region13: #{model_forward.3} parent=0 // pred_fallthru
    _
  %v14 = vld [vmem:[%s0] sm:$0xff]
  %v15 = vld [vmem:[%s0 + $0x8] sm:$0xff]
  %v16 = vld [vmem:[%s1] sm:$0xff]
  %v17 = vld [vmem:[%s1 + $0x8] sm:$0xff]
  %v18 = vld [vmem:[%s2] sm:$0xff]
  %v19 = vld [vmem:[%s2 + $0x8] sm:$0xff]
  %20 = vmax.xlane.f32.xlu0 %v14
  %v21 = vpop.xlane.xlu0 %20
  %22 = vmax.xlane.f32.xlu0 %v15
  %v23 = vpop.xlane.xlu0 %22
  %v24 = vsub.f32 %v14, %v21
  %v25 = vsub.f32 %v15, %v23
  %v26 = vmul.f32 %v24, 1.442695
  %v27 = vpow.pop %v26
  %v28 = vmul.f32 %v25, 1.442695
  %v29 = vpow.pop %v28
  %30 = vadd.xlane.f32.xlu0 %v27
  %v31 = vpop.xlane.xlu0 %30
  %32 = vadd.xlane.f32.xlu0 %v29
  %v33 = vpop.xlane.xlu0 %32
  %v34 = vlaneseq
  %v35 = vand.u32 %v34, 127
  %36 = vset.pattern.permute.xlu0 0
  %37 = vperm.xlu0 %36, %v16
  %v38 = vpop.permute.xlu0 %37
  %39 = vset.pattern.permute.xlu0 0
  %40 = vperm.xlu0 %39, %v17
  %v41 = vpop.permute.xlu0 %40
  %vm42 = vcmp.eq.s32.totalorder %v35, %v38
  %vm43 = vcmp.eq.s32.totalorder %v35, %v41
  %v44 = vsel %vm42, %v24, 0.0
  %v45 = vsel %vm43, %v25, 0.0
  %46 = vadd.xlane.f32.xlu0 %v44
  %v47 = vpop.xlane.xlu0 %46
  %48 = vadd.xlane.f32.xlu0 %v45
  %v49 = vpop.xlane.xlu0 %48
  %v50 = vlog2.pop %v31
  %v51 = vmul.f32 %v50, 0.6931472
  %v52 = vlog2.pop %v33
  %v53 = vmul.f32 %v52, 0.6931472
  %v54 = vsub.f32 %v51, %v47
  %v55 = vsub.f32 %v53, %v49
  %v56 = vmul.f32 %v54, %v18
  %v57 = vmul.f32 %v55, %v19
  %vm58 = vcmask 7168
  %v59 = vsel %vm58, %v56, 0.0
  %v60 = vsel %vm58, %v57, 0.0
  %v61 = vadd.f32 %v59, %v60
  %62 = vadd.xlane.f32.xlu0 %v61
  %v63 = vpop.xlane.xlu0 %62
  %v64 = vrot.slane %v63, 4
  %v65 = vadd.f32 %v63, %v64
  %v66 = vrot.slane %v65, 2
  %v67 = vadd.f32 %v65, %v66
  %v68 = vrot.slane %v67, 1
  %v69 = vadd.f32 %v67, %v68
  %s70 = vtos %v69
  %v71 = vsel %vm58, %v18, 0.0
  %v72 = vsel %vm58, %v19, 0.0
  %v73 = vadd.f32 %v71, %v72
  %74 = vadd.xlane.f32.xlu0 %v73
  %v75 = vpop.xlane.xlu0 %74
  %v76 = vrot.slane %v75, 4
  %v77 = vadd.f32 %v75, %v76
  %v78 = vrot.slane %v77, 2
  %v79 = vadd.f32 %v77, %v78
  %v80 = vrot.slane %v79, 1
  %v81 = vadd.f32 %v79, %v80
  %s82 = vtos %v81
  %v83 = vlaneseq
  %v84 = vshrl.u32 %v83, 7
  %vm85 = vcmp.eq.s32.totalorder %v84, 0
  %vm86 = vcmp.eq.s32.totalorder %v35, 0
  %vm87 = vmand %vm85, %vm86
  %vm88 = vcmp.eq.s32.totalorder %v35, 1
  %vm89 = vmand %vm85, %vm88
  %v90 = vstv %s82
  %v91 = vsel %vm89, %v90, 0.0
  %v92 = vstv %s70
  %v93 = vsel %vm87, %v92, %v91
  %94 = vst [vmem:[%s3] sm:$0xff] %v93
  // Predicated region
  $region14: #{model_forward.3} parent=0 // pred_check
    _
  $region15: #{model_forward.3} parent=0 // pred_check_branch
    %96 = sbr.rel (0) target = $region17
  $region16: #{model_forward.3} parent=0 // pred_region
    _
  $region17: #{model_forward.3} parent=0 // pred_fallthru
    _
  // Predicated region
  $region18: #{model_forward.3} parent=0 // pred_check
    _
  $region19: #{model_forward.3} parent=0 // pred_check_branch
    %98 = sbr.rel (0) target = $region21
  $region20: #{model_forward.3} parent=0 // pred_region
    _
  $region21: #{model_forward.3} parent=0 // pred_fallthru
    _

</llo_original>
